<compile_context>
chip_gen: v5e
topology: v5e:2x2
jax: 0.10.0
libtpu: 0.0.40
codegen_flags: <defaults>
</compile_context>

<pallas_src>
import functools

import jax
import jax.numpy as jnp
from jax import lax
from jax.experimental import pallas as pl
from jax.experimental.pallas import tpu as pltpu


def _sobelxy_kernel(x_ref, o_ref, *, img_w, compute_dtype):
    """One column block: TB whole images side by side along the lane axis.

    x_ref / o_ref: (H, TN) with TN = TB * img_w; column c holds pixel
    (image b, row h, col w) with c = b * img_w + w.
    """
    h, tn = x_ref.shape
    x = x_ref[...].astype(compute_dtype)

    # Banded vertical-tap matrices generated in-register (no constant operands,
    # nothing to DMA or double-buffer).
    r = lax.broadcasted_iota(jnp.int32, (h, h), 0)
    c = lax.broadcasted_iota(jnp.int32, (h, h), 1)
    sv = ((r == c).astype(compute_dtype) * 2
          + (jnp.abs(r - c) == 1).astype(compute_dtype))        # vertical [1, 2, 1]
    dv = ((c == r - 1).astype(compute_dtype)
          - (c == r + 1).astype(compute_dtype))                 # vertical [1, 0, -1]

    # Vertical taps: one fat MXU matmul each, (H,H) @ (H, TN), f32 accumulation.
    vs = jnp.dot(sv, x, preferred_element_type=jnp.float32)     # column-smoothed
    vd = jnp.dot(dv, x, preferred_element_type=jnp.float32)     # column-differenced

    # Horizontal taps: lane shifts (XLU) + per-image boundary masks (VPU).
    col = lax.broadcasted_iota(jnp.int32, (h, tn), 1)           # local column index
    if (img_w & (img_w - 1)) == 0:                              # pow2: cheap AND
        w_in_img = jnp.bitwise_and(col, img_w - 1)
    else:
        w_in_img = col % img_w

    shifts = (1, tn - 1)                                        # +1 and -1 (mod TN)
    oks = []
    for s in shifts:
        src = pltpu.roll(col, s, axis=1)                        # actual source column
        oks.append(((src == col - 1) & (w_in_img > 0))
                   | ((src == col + 1) & (w_in_img < img_w - 1)))

    def nbr(y, i):                                              # in-image neighbour or 0
        return jnp.where(oks[i], pltpu.roll(y, shifts[i], axis=1), 0.0)

    gx = nbr(vs, 0) - nbr(vs, 1)                                # sobel-x (up to sign)
    gy = nbr(vd, 0) + 2.0 * vd + nbr(vd, 1)                     # sobel-y
    o_ref[...] = (jnp.abs(gx) + jnp.abs(gy)).astype(o_ref.dtype)


def _pick_block_cols(n_imgs, img_w, img_h, in_itemsize, vmem_budget_bytes):
    """Columns per grid block: a whole number of images, lane-dense when possible."""
    total = n_imgs * img_w
    # in + out blocks double-buffered by the pipeline, plus ~6 (H,TN) f32 temporaries.
    per_col = img_h * (4 * in_itemsize + 6 * 4)
    max_cols = max(img_w, vmem_budget_bytes // per_col)
    candidates = [tb * img_w for tb in range(1, n_imgs + 1)
                  if n_imgs % tb == 0
                  and (tb * img_w % 128 == 0 or tb * img_w == total)]
    fitting = [cand for cand in candidates if cand <= max_cols]
    return max(fitting) if fitting else min(candidates)


def sobelxy(x, *, vmem_block_budget_bytes=24 * 1024 * 1024):
    """x: (B, C, H, W) -> |sobel_x(x)| + |sobel_y(x)|, shape (B, C, H, W)."""
    B, C, H, W = x.shape
    BC = B * C
    total_cols = BC * W
    in_dt = jnp.dtype(x.dtype)
    compute_dtype = jnp.bfloat16 if in_dt == jnp.dtype(jnp.bfloat16) else jnp.float32

    # Lane-dense layout: (image, column) on the lane axis -> (H, B*C*W).  Pure layout
    # plumbing done once by XLA outside the kernel (sanctioned for small W).
    xcols = jnp.transpose(x.reshape(BC, H, W), (1, 0, 2)).reshape(H, total_cols)

    tn = _pick_block_cols(BC, W, H, in_dt.itemsize, vmem_block_budget_bytes)
    grid = (total_cols // tn,)

    kernel = functools.partial(_sobelxy_kernel, img_w=W, compute_dtype=compute_dtype)

    cost = pl.CostEstimate(
        flops=4 * H * H * total_cols + 14 * H * total_cols,
        transcendentals=0,
        bytes_accessed=2 * H * total_cols * in_dt.itemsize,
    )
    vmem_limit = int(min(100 * 1024 * 1024,
                         max(16 * 1024 * 1024,
                             H * tn * (4 * in_dt.itemsize + 8 * 4) + (2 << 20))))

    ocols = pl.pallas_call(
        kernel,
        out_shape=jax.ShapeDtypeStruct((H, total_cols), x.dtype),
        grid_spec=pltpu.PrefetchScalarGridSpec(
            num_scalar_prefetch=0,
            grid=grid,
            in_specs=[pl.BlockSpec((H, tn), lambda i: (0, i))],
            out_specs=pl.BlockSpec((H, tn), lambda i: (0, i)),
        ),
        compiler_params=pltpu.CompilerParams(
            dimension_semantics=("parallel",),   # independent column blocks; v7x shards
            vmem_limit_bytes=vmem_limit,
        ),
        cost_estimate=cost,
    )(xcols)

    return jnp.transpose(ocols.reshape(H, BC, W), (1, 0, 2)).reshape(B, C, H, W)


if __name__ == "__main__":
    # Sobelxy(channels=4): B=2, C=4, H=W=16
    B, C, H, W = 2, 4, 16, 16
    key = jax.random.PRNGKey(0)
    x = jax.random.normal(key, (B, C, H, W), dtype=jnp.float32)

    out = jax.jit(sobelxy)(x)
    out = jax.block_until_ready(out)

    # Reference: depthwise 3x3 convs (same Sobel filter on every channel), |.| + |.|
    sobel = jnp.array([[1.0, 0.0, -1.0],
                       [2.0, 0.0, -2.0],
                       [1.0, 0.0, -1.0]], dtype=jnp.float32)
    wx = jnp.broadcast_to(sobel, (C, 1, 3, 3))
    wy = jnp.broadcast_to(sobel.T, (C, 1, 3, 3))

    def dwconv(inp, w):
        return lax.conv_general_dilated(
            inp, w, window_strides=(1, 1), padding=((1, 1), (1, 1)),
            dimension_numbers=("NCHW", "OIHW", "NCHW"),
            feature_group_count=C, precision=lax.Precision.HIGHEST)

    ref = jnp.abs(dwconv(x, wx)) + jnp.abs(dwconv(x, wy))

    assert out.shape == (B, C, H, W)
    err = float(jnp.max(jnp.abs(out - ref)))
    assert jnp.allclose(out, ref, atol=1e-2, rtol=1e-2), err
    print("KERNEL_OK")
</pallas_src>

<mosaic_0001>
module attributes {stable_mosaic.version = 11 : i64} {
  func.func @_sobelxy_kernel(%arg0: i32, %arg1: memref<16x128xf32, #tpu.memory_space<vmem>>, %arg2: memref<16x128xf32, #tpu.memory_space<vmem>>) attributes {dimension_semantics = [#tpu.dimension_semantics<parallel>], iteration_bounds = array<i64: 1>, scalar_prefetch = 0 : i64, scratch_operands = 0 : i64, tpu.core_type = #tpu.core_type<tc>, window_params = [{transform_indices = @transform_0, window_bounds = array<i64: 16, 128>}, {transform_indices = @transform_1, window_bounds = array<i64: 16, 128>}]} {
    %c0 = arith.constant 0 : index
    %c0_0 = arith.constant 0 : index
    %0 = vector.load %arg1[%c0, %c0_0] : memref<16x128xf32, #tpu.memory_space<vmem>>, vector<16x128xf32>
    %1 = tpu.iota {dimensions = array<i32: 0>} : vector<16x16xi32>
    %2 = tpu.iota {dimensions = array<i32: 1>} : vector<16x16xi32>
    %3 = arith.cmpi eq, %1, %2 : vector<16x16xi32>
    %4 = arith.extui %3 : vector<16x16xi1> to vector<16x16xi32>
    %5 = arith.sitofp %4 : vector<16x16xi32> to vector<16x16xf32>
    %cst = arith.constant 2.000000e+00 : f32
    %6 = vector.broadcast %cst : f32 to vector<16x16xf32>
    %7 = arith.mulf %5, %6 : vector<16x16xf32>
    %8 = arith.subi %1, %2 : vector<16x16xi32>
    %9 = math.absi %8 : vector<16x16xi32>
    %c1_i32 = arith.constant 1 : i32
    %10 = vector.broadcast %c1_i32 : i32 to vector<16x16xi32>
    %11 = arith.cmpi eq, %9, %10 : vector<16x16xi32>
    %12 = arith.extui %11 : vector<16x16xi1> to vector<16x16xi32>
    %13 = arith.sitofp %12 : vector<16x16xi32> to vector<16x16xf32>
    %14 = arith.addf %7, %13 : vector<16x16xf32>
    %c1_i32_1 = arith.constant 1 : i32
    %15 = vector.broadcast %c1_i32_1 : i32 to vector<16x16xi32>
    %16 = arith.subi %1, %15 : vector<16x16xi32>
    %17 = arith.cmpi eq, %2, %16 : vector<16x16xi32>
    %18 = arith.extui %17 : vector<16x16xi1> to vector<16x16xi32>
    %19 = arith.sitofp %18 : vector<16x16xi32> to vector<16x16xf32>
    %c1_i32_2 = arith.constant 1 : i32
    %20 = vector.broadcast %c1_i32_2 : i32 to vector<16x16xi32>
    %21 = arith.addi %1, %20 : vector<16x16xi32>
    %22 = arith.cmpi eq, %2, %21 : vector<16x16xi32>
    %23 = arith.extui %22 : vector<16x16xi1> to vector<16x16xi32>
    %24 = arith.sitofp %23 : vector<16x16xi32> to vector<16x16xf32>
    %25 = arith.subf %19, %24 : vector<16x16xf32>
    %cst_3 = arith.constant dense<0.000000e+00> : vector<16x128xf32>
    %26 = tpu.matmul %14, %0, %cst_3 {dimension_numbers = #tpu.dot_dimension_numbers<[1], [0], [0], [1], [0, 0, 1, 1], [], []>} : vector<16x16xf32>, vector<16x128xf32>, vector<16x128xf32> -> vector<16x128xf32>
    %cst_4 = arith.constant dense<0.000000e+00> : vector<16x128xf32>
    %27 = tpu.matmul %25, %0, %cst_4 {dimension_numbers = #tpu.dot_dimension_numbers<[1], [0], [0], [1], [0, 0, 1, 1], [], []>} : vector<16x16xf32>, vector<16x128xf32>, vector<16x128xf32> -> vector<16x128xf32>
    %28 = tpu.iota {dimensions = array<i32: 1>} : vector<16x128xi32>
    %c15_i32 = arith.constant 15 : i32
    %29 = vector.broadcast %c15_i32 : i32 to vector<16x128xi32>
    %30 = arith.andi %28, %29 : vector<16x128xi32>
    %c1_i32_5 = arith.constant 1 : i32
    %31 = tpu.dynamic_rotate %28 by %c1_i32_5 dim 1 : vector<16x128xi32>, i32 -> vector<16x128xi32>
    %c1_i32_6 = arith.constant 1 : i32
    %32 = vector.broadcast %c1_i32_6 : i32 to vector<16x128xi32>
    %33 = arith.subi %28, %32 : vector<16x128xi32>
    %34 = arith.cmpi eq, %31, %33 : vector<16x128xi32>
    %c0_i32 = arith.constant 0 : i32
    %35 = vector.broadcast %c0_i32 : i32 to vector<16x128xi32>
    %36 = arith.cmpi sgt, %30, %35 : vector<16x128xi32>
    %37 = arith.andi %34, %36 : vector<16x128xi1>
    %c1_i32_7 = arith.constant 1 : i32
    %38 = vector.broadcast %c1_i32_7 : i32 to vector<16x128xi32>
    %39 = arith.addi %28, %38 : vector<16x128xi32>
    %40 = arith.cmpi eq, %31, %39 : vector<16x128xi32>
    %c15_i32_8 = arith.constant 15 : i32
    %41 = vector.broadcast %c15_i32_8 : i32 to vector<16x128xi32>
    %42 = arith.cmpi slt, %30, %41 : vector<16x128xi32>
    %43 = arith.andi %40, %42 : vector<16x128xi1>
    %44 = arith.ori %37, %43 : vector<16x128xi1>
    %c127_i32 = arith.constant 127 : i32
    %45 = tpu.dynamic_rotate %28 by %c127_i32 dim 1 : vector<16x128xi32>, i32 -> vector<16x128xi32>
    %c1_i32_9 = arith.constant 1 : i32
    %46 = vector.broadcast %c1_i32_9 : i32 to vector<16x128xi32>
    %47 = arith.subi %28, %46 : vector<16x128xi32>
    %48 = arith.cmpi eq, %45, %47 : vector<16x128xi32>
    %c0_i32_10 = arith.constant 0 : i32
    %49 = vector.broadcast %c0_i32_10 : i32 to vector<16x128xi32>
    %50 = arith.cmpi sgt, %30, %49 : vector<16x128xi32>
    %51 = arith.andi %48, %50 : vector<16x128xi1>
    %c1_i32_11 = arith.constant 1 : i32
    %52 = vector.broadcast %c1_i32_11 : i32 to vector<16x128xi32>
    %53 = arith.addi %28, %52 : vector<16x128xi32>
    %54 = arith.cmpi eq, %45, %53 : vector<16x128xi32>
    %c15_i32_12 = arith.constant 15 : i32
    %55 = vector.broadcast %c15_i32_12 : i32 to vector<16x128xi32>
    %56 = arith.cmpi slt, %30, %55 : vector<16x128xi32>
    %57 = arith.andi %54, %56 : vector<16x128xi1>
    %58 = arith.ori %51, %57 : vector<16x128xi1>
    %c1_i32_13 = arith.constant 1 : i32
    %59 = tpu.dynamic_rotate %26 by %c1_i32_13 dim 1 : vector<16x128xf32>, i32 -> vector<16x128xf32>
    %cst_14 = arith.constant 0.000000e+00 : f32
    %60 = vector.broadcast %cst_14 : f32 to vector<16x128xf32>
    %61 = arith.select %44, %59, %60 : vector<16x128xi1>, vector<16x128xf32>
    %c127_i32_15 = arith.constant 127 : i32
    %62 = tpu.dynamic_rotate %26 by %c127_i32_15 dim 1 : vector<16x128xf32>, i32 -> vector<16x128xf32>
    %cst_16 = arith.constant 0.000000e+00 : f32
    %63 = vector.broadcast %cst_16 : f32 to vector<16x128xf32>
    %64 = arith.select %58, %62, %63 : vector<16x128xi1>, vector<16x128xf32>
    %65 = arith.subf %61, %64 : vector<16x128xf32>
    %c1_i32_17 = arith.constant 1 : i32
    %66 = tpu.dynamic_rotate %27 by %c1_i32_17 dim 1 : vector<16x128xf32>, i32 -> vector<16x128xf32>
    %cst_18 = arith.constant 0.000000e+00 : f32
    %67 = vector.broadcast %cst_18 : f32 to vector<16x128xf32>
    %68 = arith.select %44, %66, %67 : vector<16x128xi1>, vector<16x128xf32>
    %cst_19 = arith.constant 2.000000e+00 : f32
    %69 = vector.broadcast %cst_19 : f32 to vector<16x128xf32>
    %70 = arith.mulf %69, %27 : vector<16x128xf32>
    %71 = arith.addf %68, %70 : vector<16x128xf32>
    %c127_i32_20 = arith.constant 127 : i32
    %72 = tpu.dynamic_rotate %27 by %c127_i32_20 dim 1 : vector<16x128xf32>, i32 -> vector<16x128xf32>
    %cst_21 = arith.constant 0.000000e+00 : f32
    %73 = vector.broadcast %cst_21 : f32 to vector<16x128xf32>
    %74 = arith.select %58, %72, %73 : vector<16x128xi1>, vector<16x128xf32>
    %75 = arith.addf %71, %74 : vector<16x128xf32>
    %76 = math.absf %65 : vector<16x128xf32>
    %77 = math.absf %75 : vector<16x128xf32>
    %78 = arith.addf %76, %77 : vector<16x128xf32>
    %c0_22 = arith.constant 0 : index
    %c0_23 = arith.constant 0 : index
    %79 = vector.load %arg2[%c0_22, %c0_23] : memref<16x128xf32, #tpu.memory_space<vmem>>, vector<16x128xf32>
    tpu.vector_store %arg2[%c0_22, %c0_23], %78 {strides = array<i32>} : memref<16x128xf32, #tpu.memory_space<vmem>>, vector<16x128xf32>,
    return
  }
  func.func @transform_0(%arg0: i32) -> (i32, i32) {
    %c0_i32 = arith.constant 0 : i32
    %c0_i32_0 = arith.constant 0 : i32
    return %c0_i32, %arg0 : i32, i32
  }
  func.func @transform_1(%arg0: i32) -> (i32, i32) {
    %c0_i32 = arith.constant 0 : i32
    %c0_i32_0 = arith.constant 0 : i32
    return %c0_i32, %arg0 : i32, i32
  }
}

</mosaic_0001>

<llo_original>
// kernel: sobelxy.1
$region0: #{sobelxy.1}
  #allocation0 [shape = 'u32[]', space=smem, size = 0x4, offset = 0x4, fixed_abs, tag = 'smem constant byte address 0x4 - core index']
  #allocation1 [shape = 'u32[72,128]{1,0:T(1,128)}', space=vmem, size = 0x9000, scoped, tag = 'internal scratch']
  %s0 = inlined_call_operand.vmem [shape: f32[16,128], index: 0, kind: input, shape index: {}]
  %s1 = inlined_call_operand.vmem [shape: f32[16,128], index: 1, kind: output, shape index: {}]
  %s2 = sld [smem:[#allocation0]]
  $region14: #{sobelxy.1} parent=0
    _
  %s4 = ssub.s32 1, %s2
  %s5 = scalar_select 0, %s4, %s2
  // Predicated region
  $region2: #{sobelxy.1} parent=0 // pred_check
    _
  $region3: #{sobelxy.1} parent=0 // pred_check_branch
    %7 = sbr.rel (0) target = $region5
  $region4: #{sobelxy.1} parent=0 // pred_region
    _
  $region5: #{sobelxy.1} parent=0 // pred_fallthru
    _
  %v8 = vld [vmem:[%s0] sm:$0xff]
  %v9 = vld [vmem:[%s0 + $0x8] sm:$0xff]
  %v10 = vlaneseq
  %v11 = vshrl.u32 %v10, 7
  %v12 = vadd.s32 %v11, 8
  %v13 = vlaneseq
  %v14 = vand.u32 %v13, 127
  %vm15 = vcmp.eq.s32.totalorder %v11, %v14
  %vm16 = vcmp.eq.s32.totalorder %v12, %v14
  %v17 = vsel %vm15, 1, 0
  %v18 = vsel %vm16, 1, 0
  %v19 = vcvt.s32.f32 %v17
  %v20 = vcvt.s32.f32 %v18
  %v21 = vmul.f32 %v19, 2.0
  %v22 = vmul.f32 %v20, 2.0
  %v23 = vsub.s32 %v11, %v14
  %v24 = vsub.s32 %v12, %v14
  %vm25 = vcmp.lt.s32.totalorder %v23, 0
  %v26 = vsub.s32 0, %v23
  %v27 = vsel %vm25, %v26, %v23
  %vm28 = vcmp.lt.s32.totalorder %v24, 0
  %v29 = vsub.s32 0, %v24
  %v30 = vsel %vm28, %v29, %v24
  %vm31 = vcmp.eq.s32.totalorder %v27, 1
  %vm32 = vcmp.eq.s32.totalorder %v30, 1
  %v33 = vsel %vm31, 1, 0
  %v34 = vsel %vm32, 1, 0
  %v35 = vcvt.s32.f32 %v33
  %v36 = vcvt.s32.f32 %v34
  %v37 = vadd.f32 %v21, %v35
  %v38 = vadd.f32 %v22, %v36
  %v39 = vsub.s32 %v11, 1
  %v40 = vsub.s32 %v12, 1
  %vm41 = vcmp.eq.s32.totalorder %v14, %v39
  %vm42 = vcmp.eq.s32.totalorder %v14, %v40
  %v43 = vsel %vm41, 1, 0
  %v44 = vsel %vm42, 1, 0
  %v45 = vcvt.s32.f32 %v43
  %v46 = vcvt.s32.f32 %v44
  %v47 = vadd.s32 %v11, 1
  %v48 = vadd.s32 %v12, 1
  %vm49 = vcmp.eq.s32.totalorder %v14, %v47
  %vm50 = vcmp.eq.s32.totalorder %v14, %v48
  %v51 = vsel %vm49, 1, 0
  %v52 = vsel %vm50, 1, 0
  %v53 = vcvt.s32.f32 %v51
  %v54 = vcvt.s32.f32 %v52
  %v55 = vsub.f32 %v45, %v53
  %v56 = vsub.f32 %v46, %v54
  %vm57 = vcmask 130048
  %v59 = vsel %vm57, %v37, 0
  %v62 = vsel %vm57, %v38, 0
  %64 = vmatpush.msra.mxu0 0.0
  %65 = vmatpush.msra.mxu0 0.0
  %66 = vmatpush.msra.mxu0 0.0
  %67 = vmatpush.msra.mxu0 0.0
  %68 = vmatpush.msra.mxu0 0.0
  %69 = vmatpush.msra.mxu0 0.0
  %70 = vmatpush.msra.mxu0 0.0
  %71 = vmatpush.msra.mxu0 0.0
  %72 = vmatpush.msra.mxu0 0.0
  %73 = vmatpush.msra.mxu0 0.0
  %74 = vmatpush.msra.mxu0 0.0
  %75 = vmatpush.msra.mxu0 0.0
  %76 = vmatpush.msra.mxu0 0.0
  %77 = vmatpush.msra.mxu0 0.0
  %78 = vmatpush.msra.mxu0 %v9
  %79 = vmatpush.msra.mxu0 %v8
  %80 = vmatmul.f32.gmra.mxu0 %v59
  %v81 = vpop.f32.mrf.mxu0
  %v82 = vadd.f32 0.0, %v81
  %83 = vmatmul.f32.gmra.mxu0 %v62
  %v84 = vpop.f32.mrf.mxu0
  %v85 = vadd.f32 0.0, %v84
  %86 = vdwg.mxu0
  %v88 = vsel %vm57, %v55, 0
  %v91 = vsel %vm57, %v56, 0
  %93 = vmatpush.msra.mxu0 0.0
  %94 = vmatpush.msra.mxu0 0.0
  %95 = vmatpush.msra.mxu0 0.0
  %96 = vmatpush.msra.mxu0 0.0
  %97 = vmatpush.msra.mxu0 0.0
  %98 = vmatpush.msra.mxu0 0.0
  %99 = vmatpush.msra.mxu0 0.0
  %100 = vmatpush.msra.mxu0 0.0
  %101 = vmatpush.msra.mxu0 0.0
  %102 = vmatpush.msra.mxu0 0.0
  %103 = vmatpush.msra.mxu0 0.0
  %104 = vmatpush.msra.mxu0 0.0
  %105 = vmatpush.msra.mxu0 0.0
  %106 = vmatpush.msra.mxu0 0.0
  %107 = vmatpush.msra.mxu0 %v9
  %108 = vmatpush.msra.mxu0 %v8
  %109 = vmatmul.f32.gmra.mxu0 %v88
  %v110 = vpop.f32.mrf.mxu0
  %v111 = vadd.f32 0.0, %v110
  %112 = vmatmul.f32.gmra.mxu0 %v91
  %v113 = vpop.f32.mrf.mxu0
  %v114 = vadd.f32 0.0, %v113
  %115 = vdwg.mxu0
  %v116 = vand.u32 %v14, 15
  %117 = vrot.lane.b32.xlu0 %v14, 1
  %v118 = vpop.permute.xlu0 %117
  %v119 = vsub.s32 %v14, 1
  %vm120 = vcmp.eq.s32.totalorder %v118, %v119
  %vm121 = vcmp.gt.s32.totalorder %v116, 0
  %vm122 = vmand %vm120, %vm121
  %v123 = vadd.s32 %v14, 1
  %vm124 = vcmp.eq.s32.totalorder %v118, %v123
  %vm125 = vcmp.lt.s32.totalorder %v116, 15
  %vm126 = vmand %vm124, %vm125
  %vm127 = vmor %vm122, %vm126
  %128 = vrot.lane.b32.xlu0 %v14, 127
  %v129 = vpop.permute.xlu0 %128
  %vm130 = vcmp.eq.s32.totalorder %v129, %v119
  %vm131 = vmand %vm130, %vm121
  %vm132 = vcmp.eq.s32.totalorder %v129, %v123
  %vm133 = vmand %vm132, %vm125
  %vm134 = vmor %vm131, %vm133
  %135 = vrot.lane.b32.xlu0 %v82, 1
  %v136 = vpop.permute.xlu0 %135
  %137 = vrot.lane.b32.xlu0 %v85, 1
  %v138 = vpop.permute.xlu0 %137
  %v139 = vsel %vm127, %v136, 0.0
  %v140 = vsel %vm127, %v138, 0.0
  %141 = vrot.lane.b32.xlu0 %v82, 127
  %v142 = vpop.permute.xlu0 %141
  %143 = vrot.lane.b32.xlu0 %v85, 127
  %v144 = vpop.permute.xlu0 %143
  %v145 = vsel %vm134, %v142, 0.0
  %v146 = vsel %vm134, %v144, 0.0
  %v147 = vsub.f32 %v139, %v145
  %v148 = vsub.f32 %v140, %v146
  %149 = vrot.lane.b32.xlu0 %v111, 1
  %v150 = vpop.permute.xlu0 %149
  %151 = vrot.lane.b32.xlu0 %v114, 1
  %v152 = vpop.permute.xlu0 %151
  %v153 = vsel %vm127, %v150, 0.0
  %v154 = vsel %vm127, %v152, 0.0
  %v155 = vmul.f32 %v111, 2.0
  %v156 = vmul.f32 %v114, 2.0
  %v157 = vadd.f32 %v153, %v155
  %v158 = vadd.f32 %v154, %v156
  %159 = vrot.lane.b32.xlu0 %v111, 127
  %v160 = vpop.permute.xlu0 %159
  %161 = vrot.lane.b32.xlu0 %v114, 127
  %v162 = vpop.permute.xlu0 %161
  %v163 = vsel %vm134, %v160, 0.0
  %v164 = vsel %vm134, %v162, 0.0
  %v165 = vadd.f32 %v157, %v163
  %v166 = vadd.f32 %v158, %v164
  %v167 = vand.u32 2147483647, %v147
  %v168 = vand.u32 2147483647, %v148
  %v169 = vand.u32 2147483647, %v165
  %v170 = vand.u32 2147483647, %v166
  %v171 = vadd.f32 %v167, %v169
  %v172 = vadd.f32 %v168, %v170
  %173 = vst [vmem:[%s1] sm:$0xff] %v171
  %174 = vst [vmem:[%s1 + $0x8] sm:$0xff] %v172
  // Predicated region
  $region6: #{sobelxy.1} parent=0 // pred_check
    _
  $region7: #{sobelxy.1} parent=0 // pred_check_branch
    %176 = sbr.rel (0) target = $region9
  $region8: #{sobelxy.1} parent=0 // pred_region
    _
  $region9: #{sobelxy.1} parent=0 // pred_fallthru
    _
  // Predicated region
  $region10: #{sobelxy.1} parent=0 // pred_check
    _
  $region11: #{sobelxy.1} parent=0 // pred_check_branch
    %178 = sbr.rel (0) target = $region13
  $region12: #{sobelxy.1} parent=0 // pred_region
    _
  $region13: #{sobelxy.1} parent=0 // pred_fallthru
    _

</llo_original>
